<compile_context>
chip_gen: v7x
topology: tpu7x:2x2x1
jax: 0.10.0
libtpu: 0.0.40
codegen_flags: <defaults>
</compile_context>

<pallas_src>
import jax
import jax.numpy as jnp
from jax import lax
from jax.experimental import pallas as pl
from jax.experimental.pallas import tpu as pltpu
import numpy as np


def _coordconv_kernel(xp_ref, mx_ref, bp_ref, o_ref):
    """One batch element per grid step.

    xp_ref: (1, H+2, (W+2)*Cin)    zero-padded input, (W, Cin) packed on lanes
    mx_ref: (3, (W+2)*Cin, W*Cout) banded conv matrices, one per kernel row dy
    bp_ref: (H, W*Cout)            bias plane = bias + conv(coord planes)  (batch-invariant)
    o_ref : (1, H, W*Cout)         lane-dense output
    """
    H = o_ref.shape[1]
    xp = xp_ref[0]                                     # (H+2, (W+2)*Cin)

    # 3 accumulating MXU matmuls (one per kernel row); the xp slices are
    # sublane-offset only (no lane shifts, no in-kernel reshapes).
    acc = bp_ref[...] + jnp.dot(xp[0:H, :], mx_ref[0],
                                preferred_element_type=jnp.float32)
    acc = acc + jnp.dot(xp[1:H + 1, :], mx_ref[1],
                        preferred_element_type=jnp.float32)
    acc = acc + jnp.dot(xp[2:H + 2, :], mx_ref[2],
                        preferred_element_type=jnp.float32)

    o_ref[0] = acc                                     # (H, W*Cout) unmasked lane-dense store


def _banded_conv_matrices(w_slice, width):
    """w_slice: (3, 3, C, Cout) -> M of shape (3, (width+2)*C, width*Cout) with
    M[dy, (w+dx)*C + ci, w*Cout + co] = w_slice[dy, dx, ci, co]  (single einsum)."""
    kh, kw, c, cout = w_slice.shape
    sel = (jnp.arange(width + 2)[None, :, None]
           == jnp.arange(width)[None, None, :] + jnp.arange(kw)[:, None, None]
           ).astype(jnp.float32)                       # (kw, width+2, width)
    m = jnp.einsum("xpw,yxio->ypiwo", sel, w_slice.astype(jnp.float32))
    return m.reshape(kh, (width + 2) * c, width * cout)


def coordconv(x_nchw, w_hwio, bias):
    """CoordConv forward. x_nchw: (B, Cin, H, W); w_hwio: (3, 3, Cin+2, Cout)
    (torch OIHW weight transposed (2,3,1,0)); bias: (Cout,). Returns (B, Cout, H, W)."""
    B, Cin, H, W = x_nchw.shape
    kh, kw, ctot, Cout = w_hwio.shape
    assert (kh, kw) == (3, 3) and ctot == Cin + 2

    f32 = jnp.float32
    x = jnp.transpose(x_nchw, (0, 2, 3, 1)).astype(f32)              # NHWC

    # Halo zero-pad + (W, C) -> lane flattening once in the wrapper: the kernel
    # needs no VMEM scratch, no zero fills, no in-kernel reshapes.
    xp = jnp.pad(x, ((0, 0), (1, 1), (1, 1), (0, 0))).reshape(B, H + 2, (W + 2) * Cin)

    # Banded conv matrices for the data channels only.
    mx = _banded_conv_matrices(w_hwio[:, :, :Cin, :], W)             # (3, (W+2)*Cin, W*Cout)

    # AddCoords planes (torch semantics: xx varies along x_dim=H, yy along y_dim=W).
    xx = jnp.broadcast_to((2.0 * jnp.arange(H, dtype=f32) / (H - 1) - 1.0)[:, None], (H, W))
    yy = jnp.broadcast_to((2.0 * jnp.arange(W, dtype=f32) / (W - 1) - 1.0)[None, :], (H, W))
    coords = jnp.stack([xx, yy], axis=-1)[None]                      # (1, H, W, 2)

    # Coord channels are input-invariant: conv(concat([x, coords])) =
    # conv(x; W_x) + conv(coords; W_coord).  Fold the coord contribution + bias
    # into one constant (H, W*Cout) plane, computed ONCE per call (not per batch step).
    bp = lax.conv_general_dilated(
        coords, w_hwio[:, :, Cin:, :].astype(f32), (1, 1), "SAME",
        dimension_numbers=("NHWC", "HWIO", "NHWC"),
        precision=lax.Precision.HIGHEST)[0] + bias.astype(f32)       # (H, W, Cout)
    bp = bp.reshape(H, W * Cout)

    out = pl.pallas_call(
        _coordconv_kernel,
        out_shape=jax.ShapeDtypeStruct((B, H, W * Cout), f32),
        grid_spec=pltpu.PrefetchScalarGridSpec(
            num_scalar_prefetch=0,
            grid=(B,),
            in_specs=[
                pl.BlockSpec((1, H + 2, (W + 2) * Cin), lambda b: (b, 0, 0)),
                pl.BlockSpec((3, (W + 2) * Cin, W * Cout), lambda b: (0, 0, 0)),
                pl.BlockSpec((H, W * Cout), lambda b: (0, 0)),
            ],
            out_specs=pl.BlockSpec((1, H, W * Cout), lambda b: (b, 0, 0)),
        ),
        compiler_params=pltpu.CompilerParams(
            dimension_semantics=("parallel",)),                      # batch steps independent
    )(xp, mx, bp)

    return jnp.transpose(out.reshape(B, H, W, Cout), (0, 3, 1, 2))   # back to NCHW


def reference_forward(x_nchw, w_hwio, bias):
    """Pure-JAX reference of CoordConv (AddCoords + 3x3 'SAME' conv)."""
    B, Cin, H, W = x_nchw.shape
    x = jnp.transpose(x_nchw, (0, 2, 3, 1)).astype(jnp.float32)
    xx = jnp.broadcast_to(
        (2.0 * jnp.arange(H, dtype=jnp.float32) / (H - 1) - 1.0)[:, None], (H, W))
    yy = jnp.broadcast_to(
        (2.0 * jnp.arange(W, dtype=jnp.float32) / (W - 1) - 1.0)[None, :], (H, W))
    coords = jnp.broadcast_to(jnp.stack([xx, yy], axis=-1)[None], (B, H, W, 2))
    xc = jnp.concatenate([x, coords], axis=-1)
    o = lax.conv_general_dilated(
        xc, w_hwio.astype(jnp.float32), (1, 1), "SAME",
        dimension_numbers=("NHWC", "HWIO", "NHWC"),
        precision=lax.Precision.HIGHEST) + bias.astype(jnp.float32)
    return jnp.transpose(o, (0, 3, 1, 2))


if __name__ == "__main__":
    B, in_ch, out_ch, H, W = 2, 4, 8, 16, 16   # W * out_ch = 128 -> lane-dense output

    key = jax.random.PRNGKey(0)
    kx, kw_, kb = jax.random.split(key, 3)

    x = jax.random.normal(kx, (B, in_ch, H, W), dtype=jnp.float32)
    # Conv2d(in_ch + 2, out_ch, kernel_size=3, padding=1) params, HWIO layout
    w = 0.1 * jax.random.normal(kw_, (3, 3, in_ch + 2, out_ch), dtype=jnp.float32)
    b = 0.1 * jax.random.normal(kb, (out_ch,), dtype=jnp.float32)

    y = coordconv(x, w, b)
    y = jax.block_until_ready(y)

    y_ref = reference_forward(x, w, b)
    assert y.shape == (B, out_ch, H, W), y.shape
    np.testing.assert_allclose(np.asarray(y), np.asarray(y_ref),
                               atol=2e-3, rtol=2e-3)

    print("KERNEL_OK")
</pallas_src>

<mosaic_0001>
module attributes {stable_mosaic.version = 11 : i64} {
  func.func @_coordconv_kernel(%arg0: i32, %arg1: memref<1x18x72xf32, #tpu.memory_space<vmem>>, %arg2: memref<3x72x128xf32, #tpu.memory_space<vmem>>, %arg3: memref<16x128xf32, #tpu.memory_space<vmem>>, %arg4: memref<1x16x128xf32, #tpu.memory_space<vmem>>) attributes {dimension_semantics = [#tpu.dimension_semantics<parallel>], iteration_bounds = array<i64: 2>, scalar_prefetch = 0 : i64, scratch_operands = 0 : i64, tpu.core_type = #tpu.core_type<tc>, window_params = [{transform_indices = @transform_0, window_bounds = array<i64: 1, 18, 72>}, {pipeline_mode = #tpu.pipeline_mode<synchronous>, transform_indices = @transform_1, window_bounds = array<i64: 3, 72, 128>}, {pipeline_mode = #tpu.pipeline_mode<synchronous>, transform_indices = @transform_2, window_bounds = array<i64: 16, 128>}, {transform_indices = @transform_3, window_bounds = array<i64: 1, 16, 128>}]} {
    %c0 = arith.constant 0 : index
    %c0_0 = arith.constant 0 : index
    %c0_1 = arith.constant 0 : index
    %0 = vector.load %arg1[%c0, %c0_0, %c0_1] : memref<1x18x72xf32, #tpu.memory_space<vmem>>, vector<1x18x72xf32>
    %1 = vector.shape_cast %0 : vector<1x18x72xf32> to vector<18x72xf32>
    %c0_2 = arith.constant 0 : index
    %c0_3 = arith.constant 0 : index
    %2 = vector.load %arg3[%c0_2, %c0_3] : memref<16x128xf32, #tpu.memory_space<vmem>>, vector<16x128xf32>
    %3 = vector.extract_strided_slice %1 {offsets = [0, 0], sizes = [16, 72], strides = [1, 1]} : vector<18x72xf32> to vector<16x72xf32>
    %c0_4 = arith.constant 0 : index
    %c0_5 = arith.constant 0 : index
    %c0_6 = arith.constant 0 : index
    %4 = vector.load %arg2[%c0_4, %c0_5, %c0_6] : memref<3x72x128xf32, #tpu.memory_space<vmem>>, vector<1x72x128xf32>
    %5 = vector.shape_cast %4 : vector<1x72x128xf32> to vector<72x128xf32>
    %cst = arith.constant dense<0.000000e+00> : vector<16x128xf32>
    %6 = tpu.matmul %3, %5, %cst {dimension_numbers = #tpu.dot_dimension_numbers<[1], [0], [0], [1], [0, 0, 1, 1], [], []>} : vector<16x72xf32>, vector<72x128xf32>, vector<16x128xf32> -> vector<16x128xf32>
    %7 = arith.addf %2, %6 : vector<16x128xf32>
    %8 = vector.extract_strided_slice %1 {offsets = [1, 0], sizes = [16, 72], strides = [1, 1]} : vector<18x72xf32> to vector<16x72xf32>
    %c1 = arith.constant 1 : index
    %c0_7 = arith.constant 0 : index
    %c0_8 = arith.constant 0 : index
    %9 = vector.load %arg2[%c1, %c0_7, %c0_8] : memref<3x72x128xf32, #tpu.memory_space<vmem>>, vector<1x72x128xf32>
    %10 = vector.shape_cast %9 : vector<1x72x128xf32> to vector<72x128xf32>
    %cst_9 = arith.constant dense<0.000000e+00> : vector<16x128xf32>
    %11 = tpu.matmul %8, %10, %cst_9 {dimension_numbers = #tpu.dot_dimension_numbers<[1], [0], [0], [1], [0, 0, 1, 1], [], []>} : vector<16x72xf32>, vector<72x128xf32>, vector<16x128xf32> -> vector<16x128xf32>
    %12 = arith.addf %7, %11 : vector<16x128xf32>
    %13 = vector.extract_strided_slice %1 {offsets = [2, 0], sizes = [16, 72], strides = [1, 1]} : vector<18x72xf32> to vector<16x72xf32>
    %c2 = arith.constant 2 : index
    %c0_10 = arith.constant 0 : index
    %c0_11 = arith.constant 0 : index
    %14 = vector.load %arg2[%c2, %c0_10, %c0_11] : memref<3x72x128xf32, #tpu.memory_space<vmem>>, vector<1x72x128xf32>
    %15 = vector.shape_cast %14 : vector<1x72x128xf32> to vector<72x128xf32>
    %cst_12 = arith.constant dense<0.000000e+00> : vector<16x128xf32>
    %16 = tpu.matmul %13, %15, %cst_12 {dimension_numbers = #tpu.dot_dimension_numbers<[1], [0], [0], [1], [0, 0, 1, 1], [], []>} : vector<16x72xf32>, vector<72x128xf32>, vector<16x128xf32> -> vector<16x128xf32>
    %17 = arith.addf %12, %16 : vector<16x128xf32>
    %c0_13 = arith.constant 0 : index
    %c0_14 = arith.constant 0 : index
    %c0_15 = arith.constant 0 : index
    %18 = vector.load %arg4[%c0_13, %c0_14, %c0_15] : memref<1x16x128xf32, #tpu.memory_space<vmem>>, vector<1x16x128xf32>
    %19 = vector.shape_cast %18 : vector<1x16x128xf32> to vector<16x128xf32>
    %20 = vector.shape_cast %17 : vector<16x128xf32> to vector<1x16x128xf32>
    tpu.vector_store %arg4[%c0_13, %c0_14, %c0_15], %20 {strides = array<i32>} : memref<1x16x128xf32, #tpu.memory_space<vmem>>, vector<1x16x128xf32>,
    return
  }
  func.func @transform_0(%arg0: i32) -> (i32, i32, i32) {
    %c0_i32 = arith.constant 0 : i32
    %c0_i32_0 = arith.constant 0 : i32
    %c0_i32_1 = arith.constant 0 : i32
    return %arg0, %c0_i32, %c0_i32_0 : i32, i32, i32
  }
  func.func @transform_1(%arg0: i32) -> (i32, i32, i32) {
    %c0_i32 = arith.constant 0 : i32
    %c0_i32_0 = arith.constant 0 : i32
    %c0_i32_1 = arith.constant 0 : i32
    %c0_i32_2 = arith.constant 0 : i32
    return %c0_i32, %c0_i32_0, %c0_i32_1 : i32, i32, i32
  }
  func.func @transform_2(%arg0: i32) -> (i32, i32) {
    %c0_i32 = arith.constant 0 : i32
    %c0_i32_0 = arith.constant 0 : i32
    %c0_i32_1 = arith.constant 0 : i32
    return %c0_i32, %c0_i32_0 : i32, i32
  }
  func.func @transform_3(%arg0: i32) -> (i32, i32, i32) {
    %c0_i32 = arith.constant 0 : i32
    %c0_i32_0 = arith.constant 0 : i32
    %c0_i32_1 = arith.constant 0 : i32
    return %arg0, %c0_i32, %c0_i32_0 : i32, i32, i32
  }
}

</mosaic_0001>

<llo_original>
// kernel: tpu_custom_call.1
$region0: #{tpu_custom_call.1}
  #allocation0 [shape = 'u32[]', space=smem, size = 0x4, offset = 0x4, fixed_abs, tag = 'smem constant byte address 0x4 - core index']
  #allocation1 [shape = 'u32[144,128]{1,0:T(1,128)}', space=vmem, size = 0x12000, scoped, tag = 'internal scratch']
  %s0 = inlined_call_operand.vmem [shape: f32[2,18,72], index: 0, kind: input, shape index: {}]
  %s1 = inlined_call_operand.hbm [shape: f32[3,72,128], index: 1, kind: input, shape index: {}]
  %s2 = inlined_call_operand.vmem [shape: f32[16,128], index: 2, kind: input, shape index: {}]
  %s3 = inlined_call_operand.hbm [shape: f32[2,16,128], index: 3, kind: output, shape index: {}]
  %s4 = sld [smem:[#allocation0]]
  $region49: #{tpu_custom_call.1} parent=0
    _
  %s6 = ssub.s32 1, %s4
  %s7 = scalar_select 0, %s6, %s4
  $region1: #{tpu_custom_call.1} parent=0
    #allocation2 [shape = 'u8[110592]{0}', space=vmem, size = 0x1b000, scoped, tag = 'input window, operand 1, single buffered']
    #allocation3 [shape = 's32[2]{0}', space=sflag, size = 0x8, scoped, tag = 'scoped memory for tpu_custom_call.1']
    #allocation4 [shape = 's32[2]{0}', space=sflag, size = 0x8, scoped, tag = 'scoped memory for tpu_custom_call.1']
    #allocation5 [shape = 'u8[16384]{0}', space=vmem, size = 0x4000, scoped, tag = 'output window, operand 0']
    %8 = vsyncpa [#allocation3], 0
    %9 = vsyncpa [#allocation4], 0
    %s10 = scalar_lea.sflag [#allocation4], 1
    %11 = vsyncpa %s10, 0
    loop: start=0, step=1, limit=4
    $region2: #{tpu_custom_call.1} parent=1 // loop_pre_header
      _
    $region3: #{tpu_custom_call.1} parent=1 // loop_header
      %s13 = sphi 0, %s17
      %p14 = scmp.ge.s32.totalorder %s13, 4
      %s23 = sphi 0, %s25
      %s26 = sphi 0, %s23
      %s27 = sphi 0, %s26
      %s43 = sphi 0, %s27
      %s47 = sphi 0, %s47
      %s49 = sphi 0, %s47
      %s50 = sphi 0, %s49
      %s64 = sphi 0, %s50
      %s68 = sphi 0, %s68
      %s70 = sphi 0, %s68
      %s71 = sphi 0, %s70
      %s85 = sphi 0, %s71
      %s91 = sphi 0, %s93
      %s94 = sphi 0, %s91
      %s95 = sphi 0, %s94
      %s111 = sphi 0, %s95
    $region4: #{tpu_custom_call.1} parent=1 // loop_header_branch
      %16 = sbr.rel (%p14) target = $region8
    $region5: #{tpu_custom_call.1} parent=1 // loop_body
      %s18 = ssub.s32 %s13, 1
      %s19 = ssub.s32 %s13, 2
      %s20 = sadd.s32 %s13, 1
      %s21 = ssub.s32 %s13, %s20
      %p22 = scmp.eq.s32.totalorder %s21, 0
      %s24 = sadd.s32 %s23, 1
      %s25 = scalar_select %p22, %s23, %s24
      %p28 = pneg %p22
      %p29 = scmp.eq.s32.totalorder %s13, 1
      %p30 = por %p28, %p29
      %p31 = scmp.ne.s32.totalorder %s23, %s26
      %p32 = scmp.eq.s32.totalorder %s13, 0
      %p33 = por %p31, %p32
      %p34 = scmp.ne.s32.totalorder %s23, %s26
      %p35 = scmp.eq.s32.totalorder %s18, 1
      %p36 = por %p34, %p35
      %p37 = scmp.ne.s32.totalorder %s26, %s27
      %p38 = scmp.eq.s32.totalorder %s18, 0
      %p39 = por %p37, %p38
      %p40 = scmp.ne.s32.totalorder %s26, %s27
      %p41 = scmp.eq.s32.totalorder %s19, 1
      %p42 = por %p40, %p41
      %p44 = scmp.ne.s32.totalorder %s27, %s43
      %p45 = scmp.eq.s32.totalorder %s19, 0
      %p46 = por %p44, %p45
      %s48 = sadd.s32 %s47, 1
      %p51 = scmp.eq.s32.totalorder %s13, 1
      %p52 = scmp.ne.s32.totalorder %s47, %s49
      %p53 = scmp.eq.s32.totalorder %s13, 0
      %p54 = por %p52, %p53
      %p55 = scmp.ne.s32.totalorder %s47, %s49
      %p56 = scmp.eq.s32.totalorder %s18, 1
      %p57 = por %p55, %p56
      %p58 = scmp.ne.s32.totalorder %s49, %s50
      %p59 = scmp.eq.s32.totalorder %s18, 0
      %p60 = por %p58, %p59
      %p61 = scmp.ne.s32.totalorder %s49, %s50
      %p62 = scmp.eq.s32.totalorder %s19, 1
      %p63 = por %p61, %p62
      %p65 = scmp.ne.s32.totalorder %s50, %s64
      %p66 = scmp.eq.s32.totalorder %s19, 0
      %p67 = por %p65, %p66
      %s69 = sadd.s32 %s68, 1
      %p72 = scmp.eq.s32.totalorder %s13, 1
      %p73 = scmp.ne.s32.totalorder %s68, %s70
      %p74 = scmp.eq.s32.totalorder %s13, 0
      %p75 = por %p73, %p74
      %p76 = scmp.ne.s32.totalorder %s68, %s70
      %p77 = scmp.eq.s32.totalorder %s18, 1
      %p78 = por %p76, %p77
      %p79 = scmp.ne.s32.totalorder %s70, %s71
      %p80 = scmp.eq.s32.totalorder %s18, 0
      %p81 = por %p79, %p80
      %p82 = scmp.ne.s32.totalorder %s70, %s71
      %p83 = scmp.eq.s32.totalorder %s19, 1
      %p84 = por %p82, %p83
      %p86 = scmp.ne.s32.totalorder %s71, %s85
      %p87 = scmp.eq.s32.totalorder %s19, 0
      %p88 = por %p86, %p87
      %s89 = ssub.s32 %s13, %s20
      %p90 = scmp.eq.s32.totalorder %s89, 0
      %s92 = sadd.s32 %s91, 1
      %s93 = scalar_select %p90, %s91, %s92
      %p96 = pneg %p90
      %p97 = scmp.eq.s32.totalorder %s13, 1
      %p98 = por %p96, %p97
      %p99 = scmp.ne.s32.totalorder %s91, %s94
      %p100 = scmp.eq.s32.totalorder %s13, 0
      %p101 = por %p99, %p100
      %p102 = scmp.ne.s32.totalorder %s91, %s94
      %p103 = scmp.eq.s32.totalorder %s18, 1
      %p104 = por %p102, %p103
      %p105 = scmp.ne.s32.totalorder %s94, %s95
      %p106 = scmp.eq.s32.totalorder %s18, 0
      %p107 = por %p105, %p106
      %p108 = scmp.ne.s32.totalorder %s94, %s95
      %p109 = scmp.eq.s32.totalorder %s19, 1
      %p110 = por %p108, %p109
      %p112 = scmp.ne.s32.totalorder %s95, %s111
      %p113 = scmp.eq.s32.totalorder %s19, 0
      %p114 = por %p112, %p113
      %p115 = scmp.le.s32.totalorder 1, %s13
      %p116 = scmp.lt.s32.totalorder %s13, 3
      %p117 = pnand %p115, %p116
      %p118 = pneg %p117
      // Predicated region
      $region9: #{tpu_custom_call.1} parent=5 // pred_check
        _
      $region10: #{tpu_custom_call.1} parent=5 // pred_check_branch
        %120 = sbr.rel (%p117) target = $region12
      $region11: #{tpu_custom_call.1} parent=5 // pred_region
        %s121 = ssub.s32 %s13, 1
        // Predicated region
        $region13: #{tpu_custom_call.1} parent=11 // pred_check
          %p122 = pneg %p60
        $region14: #{tpu_custom_call.1} parent=11 // pred_check_branch
          %124 = sbr.rel (%p122) target = $region16
        $region15: #{tpu_custom_call.1} parent=11 // pred_region
          %s126 = ssub.s32 3456, 3456
          %127 = vsyncadd [#allocation3], %s126
          %s128 = sshll.u32 [#allocation2], 4
          %s129 = int_to_ptr.vmem [resolvable:$true] %s128
          %134 = dma.hbm_to_vmem [thread:$0]  %s1, 3456, %s129, [#allocation3], 128, 128, 8
        $region16: #{tpu_custom_call.1} parent=11 // pred_fallthru
          _
        // Predicated region
        $region17: #{tpu_custom_call.1} parent=11 // pred_check
          %p135 = pneg %p81
        $region18: #{tpu_custom_call.1} parent=11 // pred_check_branch
          %137 = sbr.rel (%p135) target = $region20
        $region19: #{tpu_custom_call.1} parent=11 // pred_region
          _
        $region20: #{tpu_custom_call.1} parent=11 // pred_fallthru
          _
      $region12: #{tpu_custom_call.1} parent=5 // pred_fallthru
        _
      %p138 = scmp.lt.s32.totalorder %s13, 2
      // Predicated region
      $region21: #{tpu_custom_call.1} parent=5 // pred_check
        %p139 = pneg %p138
      $region22: #{tpu_custom_call.1} parent=5 // pred_check_branch
        %141 = sbr.rel (%p139) target = $region24
      $region23: #{tpu_custom_call.1} parent=5 // pred_region
        // Predicated region
        $region25: #{tpu_custom_call.1} parent=23 // pred_check
          %p142 = pneg %p33
        $region26: #{tpu_custom_call.1} parent=23 // pred_check_branch
          %144 = sbr.rel (%p142) target = $region28
        $region27: #{tpu_custom_call.1} parent=23 // pred_region
          %p145 = scmp.lt.s32.totalorder %s13, 1
          %s146 = scalar_select %p145, %s13, 1
          %s147 = smul.addr %s146, 3
          %s148 = smul.addr %s147, 8
          %s149 = scalar_lea.vmem %s0, %s148
        $region28: #{tpu_custom_call.1} parent=23 // pred_fallthru
          _
      $region24: #{tpu_custom_call.1} parent=5 // pred_fallthru
        _
      %p150 = scmp.le.s32.totalorder 1, %s13
      %p151 = scmp.lt.s32.totalorder %s13, 3
      %p152 = pnand %p150, %p151
      %p153 = pneg %p152
      // Predicated region
      $region29: #{tpu_custom_call.1} parent=5 // pred_check
        _
      $region30: #{tpu_custom_call.1} parent=5 // pred_check_branch
        %155 = sbr.rel (%p152) target = $region32
      $region31: #{tpu_custom_call.1} parent=5 // pred_region
        %s156 = ssub.s32 %s13, 1
        // Predicated region
        $region33: #{tpu_custom_call.1} parent=31 // pred_check
          %p157 = pneg %p60
        $region34: #{tpu_custom_call.1} parent=31 // pred_check_branch
          %159 = sbr.rel (%p157) target = $region36
        $region35: #{tpu_custom_call.1} parent=31 // pred_region
          %160 = dma.done [#allocation3], 3456
        $region36: #{tpu_custom_call.1} parent=31 // pred_fallthru
          _
        %p161 = scmp.lt.s32.totalorder %s18, 1
        %s162 = scalar_select %p161, %s18, 1
        %s163 = smul.addr %s162, 3
        %s164 = smul.addr %s163, 8
        %s165 = scalar_lea.vmem %s0, %s164
        %p166 = pneg %p39
        %p167 = pneg %p36
        %p168 = pneg %p60
        %p169 = pneg %p57
        %p170 = pneg %p81
        %p171 = pneg %p78
        %p172 = pneg %p107
        %p173 = pneg %p104
        %s174 = sand.u32 %s94, 1
        %s175 = scalar_lea.sflag [#allocation4], %s174
        %s176 = sand.u32 %s94, 1
        %s177 = smul.addr %s176, 16
        %s178 = scalar_lea.vmem [#allocation5], %s177
        %p179 = scmp.lt.s32.totalorder %s18, 1
        %s180 = scalar_select %p179, %s18, 1
        %s181 = smul.addr %s180, 3
        %s182 = smul.addr %s181, 8
        %s183 = scalar_lea.vmem %s0, %s182
        %v184 = vld [vmem:[%s183] sm:$0xff]
        %v185 = vld [vmem:[%s183 + $0x8] sm:$0xff]
        %v186 = vld [vmem:[%s183 + $0x10] sm:$0x3]
        %v187 = vld [vmem:[%s2] sm:$0xff]
        %v188 = vld [vmem:[%s2 + $0x8] sm:$0xff]
        %v189 = vld [vmem:[#allocation2] sm:$0xff]
        %v190 = vld [vmem:[#allocation2 + $0x8] sm:$0xff]
        %v191 = vld [vmem:[#allocation2 + $0x10] sm:$0xff]
        %v192 = vld [vmem:[#allocation2 + $0x18] sm:$0xff]
        %v193 = vld [vmem:[#allocation2 + $0x20] sm:$0xff]
        %v194 = vld [vmem:[#allocation2 + $0x28] sm:$0xff]
        %v195 = vld [vmem:[#allocation2 + $0x30] sm:$0xff]
        %v196 = vld [vmem:[#allocation2 + $0x38] sm:$0xff]
        %v197 = vld [vmem:[#allocation2 + $0x40] sm:$0xff]
        %vm198 = vcmask 588800
        %v200 = vsel %vm198, %v184, 0
        %v203 = vsel %vm198, %v185, 0
        %205 = vmatprep.subr.mxu0 0.0
        %206 = vmatpush1.msra.mxu0 %v189
        %207 = vmatprep.subr.mxu0 0.0
        %208 = vmatpush1.msra.mxu0 %v190
        %209 = vmatprep.subr.mxu0 0.0
        %210 = vmatpush1.msra.mxu0 %v191
        %211 = vmatprep.subr.mxu0 0.0
        %212 = vmatpush1.msra.mxu0 %v192
        %213 = vmatprep.subr.mxu0 0.0
        %214 = vmatpush1.msra.mxu0 %v193
        %215 = vmatprep.subr.mxu0 0.0
        %216 = vmatpush1.msra.mxu0 %v194
        %217 = vmatprep.subr.mxu0 0.0
        %218 = vmatpush1.msra.mxu0 %v195
        %219 = vmatprep.subr.mxu0 0.0
        %220 = vmatpush1.msra.mxu0 %v196
        %221 = vmatprep.subr.mxu0 0.0
        %222 = vmatpush1.msra.mxu0 %v197
        %223 = vmatprep.subr.mxu0 0.0
        %224 = vmatpush1.msra.mxu0 0.0
        %225 = vmatprep.subr.mxu0 0.0
        %226 = vmatpush1.msra.mxu0 0.0
        %227 = vmatprep.subr.mxu0 0.0
        %228 = vmatpush1.msra.mxu0 0.0
        %229 = vmatprep.subr.mxu0 0.0
        %230 = vmatpush1.msra.mxu0 0.0
        %231 = vmatprep.subr.mxu0 0.0
        %232 = vmatpush1.msra.mxu0 0.0
        %233 = vmatprep.subr.mxu0 0.0
        %234 = vmatpush1.msra.mxu0 0.0
        %235 = vmatprep.subr.mxu0 0.0
        %236 = vmatpush1.msra.mxu0 0.0
        %237 = vmatprep.subr.mxu0 0.0
        %238 = vmatpush1.msra.mxu0 0.0
        %239 = vmatprep.subr.mxu0 0.0
        %240 = vmatpush1.msra.mxu0 0.0
        %241 = vmatprep.subr.mxu0 0.0
        %242 = vmatpush1.msra.mxu0 0.0
        %243 = vmatprep.subr.mxu0 0.0
        %244 = vmatpush1.msra.mxu0 0.0
        %245 = vmatprep.subr.mxu0 0.0
        %246 = vmatpush1.msra.mxu0 0.0
        %247 = vmatprep.subr.mxu0 0.0
        %248 = vmatpush1.msra.mxu0 0.0
        %249 = vmatprep.subr.mxu0 0.0
        %250 = vmatpush1.msra.mxu0 0.0
        %251 = vmatprep.subr.mxu0 0.0
        %252 = vmatpush1.msra.mxu0 0.0
        %253 = vmatprep.subr.mxu0 0.0
        %254 = vmatpush1.msra.mxu0 0.0
        %255 = vmatprep.subr.mxu0 0.0
        %256 = vmatpush1.msra.mxu0 0.0
        %257 = vmatprep.subr.mxu0 0.0
        %258 = vmatpush1.msra.mxu0 0.0
        %259 = vmatprep.subr.mxu0 0.0
        %260 = vmatpush1.msra.mxu0 0.0
        %261 = vmatprep.subr.mxu0 0.0
        %262 = vmatpush1.msra.mxu0 0.0
        %263 = vmatprep.subr.mxu0 0.0
        %264 = vmatpush1.msra.mxu0 0.0
        %265 = vmatprep.subr.mxu0 0.0
        %266 = vmatpush1.msra.mxu0 0.0
        %267 = vmatprep.subr.mxu0 0.0
        %268 = vmatpush1.msra.mxu0 0.0
        %269 = vmatprep.mubr.f32.mxu0 0.0
        %270 = vmatmul.mubr.f32.gmra.mrb[0].mxu0 %v200
        %v271 = vpop.f32.mrb[0].mxu0
        %v272 = vadd.f32 0.0, %v271
        %v273 = vpop.f32.mrb[0].mxu0
        %274 = vmatprep.mubr.f32.mxu0 0.0
        %275 = vmatmul.mubr.f32.gmra.mrb[0].mxu0 %v203
        %v276 = vpop.f32.mrb[0].mxu0
        %v277 = vadd.f32 0.0, %v276
        %v278 = vpop.f32.mrb[0].mxu0
        %279 = vdwg.mxu0
        %v280 = vadd.f32 %v187, %v272
        %v281 = vadd.f32 %v188, %v277
        %s282 = scalar_lea.vmem [#allocation2], 72
        %v283 = vld [vmem:[%s282] sm:$0xff]
        %v284 = vld [vmem:[%s282 + $0x8] sm:$0xff]
        %v285 = vld [vmem:[%s282 + $0x10] sm:$0xff]
        %v286 = vld [vmem:[%s282 + $0x18] sm:$0xff]
        %v287 = vld [vmem:[%s282 + $0x20] sm:$0xff]
        %v288 = vld [vmem:[%s282 + $0x28] sm:$0xff]
        %v289 = vld [vmem:[%s282 + $0x30] sm:$0xff]
        %v290 = vld [vmem:[%s282 + $0x38] sm:$0xff]
        %v291 = vld [vmem:[%s282 + $0x40] sm:$0xff]
        %vm293 = vcmask 1046528
        %v294 = vrot.slane %v184, 1
        %v295 = vrot.slane %v185, 1
        %v296 = vsel %vm293, %v294, %v295
        %v297 = vrot.slane %v186, 1
        %v298 = vsel %vm293, %v295, %v297
        %v299 = vsel %vm198, %v296, 0
        %v301 = vsel %vm198, %v298, 0
        %303 = vmatprep.subr.mxu0 0.0
        %304 = vmatpush1.msra.mxu0 %v283
        %305 = vmatprep.subr.mxu0 0.0
        %306 = vmatpush1.msra.mxu0 %v284
        %307 = vmatprep.subr.mxu0 0.0
        %308 = vmatpush1.msra.mxu0 %v285
        %309 = vmatprep.subr.mxu0 0.0
        %310 = vmatpush1.msra.mxu0 %v286
        %311 = vmatprep.subr.mxu0 0.0
        %312 = vmatpush1.msra.mxu0 %v287
        %313 = vmatprep.subr.mxu0 0.0
        %314 = vmatpush1.msra.mxu0 %v288
        %315 = vmatprep.subr.mxu0 0.0
        %316 = vmatpush1.msra.mxu0 %v289
        %317 = vmatprep.subr.mxu0 0.0
        %318 = vmatpush1.msra.mxu0 %v290
        %319 = vmatprep.subr.mxu0 0.0
        %320 = vmatpush1.msra.mxu0 %v291
        %321 = vmatprep.subr.mxu0 0.0
        %322 = vmatpush1.msra.mxu0 0.0
        %323 = vmatprep.subr.mxu0 0.0
        %324 = vmatpush1.msra.mxu0 0.0
        %325 = vmatprep.subr.mxu0 0.0
        %326 = vmatpush1.msra.mxu0 0.0
        %327 = vmatprep.subr.mxu0 0.0
        %328 = vmatpush1.msra.mxu0 0.0
        %329 = vmatprep.subr.mxu0 0.0
        %330 = vmatpush1.msra.mxu0 0.0
        %331 = vmatprep.subr.mxu0 0.0
        %332 = vmatpush1.msra.mxu0 0.0
        %333 = vmatprep.subr.mxu0 0.0
        %334 = vmatpush1.msra.mxu0 0.0
        %335 = vmatprep.subr.mxu0 0.0
        %336 = vmatpush1.msra.mxu0 0.0
        %337 = vmatprep.subr.mxu0 0.0
        %338 = vmatpush1.msra.mxu0 0.0
        %339 = vmatprep.subr.mxu0 0.0
        %340 = vmatpush1.msra.mxu0 0.0
        %341 = vmatprep.subr.mxu0 0.0
        %342 = vmatpush1.msra.mxu0 0.0
        %343 = vmatprep.subr.mxu0 0.0
        %344 = vmatpush1.msra.mxu0 0.0
        %345 = vmatprep.subr.mxu0 0.0
        %346 = vmatpush1.msra.mxu0 0.0
        %347 = vmatprep.subr.mxu0 0.0
        %348 = vmatpush1.msra.mxu0 0.0
        %349 = vmatprep.subr.mxu0 0.0
        %350 = vmatpush1.msra.mxu0 0.0
        %351 = vmatprep.subr.mxu0 0.0
        %352 = vmatpush1.msra.mxu0 0.0
        %353 = vmatprep.subr.mxu0 0.0
        %354 = vmatpush1.msra.mxu0 0.0
        %355 = vmatprep.subr.mxu0 0.0
        %356 = vmatpush1.msra.mxu0 0.0
        %357 = vmatprep.subr.mxu0 0.0
        %358 = vmatpush1.msra.mxu0 0.0
        %359 = vmatprep.subr.mxu0 0.0
        %360 = vmatpush1.msra.mxu0 0.0
        %361 = vmatprep.subr.mxu0 0.0
        %362 = vmatpush1.msra.mxu0 0.0
        %363 = vmatprep.subr.mxu0 0.0
        %364 = vmatpush1.msra.mxu0 0.0
        %365 = vmatprep.subr.mxu0 0.0
        %366 = vmatpush1.msra.mxu0 0.0
        %367 = vmatprep.mubr.f32.mxu0 0.0
        %368 = vmatmul.mubr.f32.gmra.mrb[0].mxu0 %v299
        %v369 = vpop.f32.mrb[0].mxu0
        %v370 = vadd.f32 0.0, %v369
        %v371 = vpop.f32.mrb[0].mxu0
        %372 = vmatprep.mubr.f32.mxu0 0.0
        %373 = vmatmul.mubr.f32.gmra.mrb[0].mxu0 %v301
        %v374 = vpop.f32.mrb[0].mxu0
        %v375 = vadd.f32 0.0, %v374
        %v376 = vpop.f32.mrb[0].mxu0
        %377 = vdwg.mxu0
        %v378 = vadd.f32 %v280, %v370
        %v379 = vadd.f32 %v281, %v375
        %s380 = scalar_lea.vmem [#allocation2], 144
        %v381 = vld [vmem:[%s380] sm:$0xff]
        %v382 = vld [vmem:[%s380 + $0x8] sm:$0xff]
        %v383 = vld [vmem:[%s380 + $0x10] sm:$0xff]
        %v384 = vld [vmem:[%s380 + $0x18] sm:$0xff]
        %v385 = vld [vmem:[%s380 + $0x20] sm:$0xff]
        %v386 = vld [vmem:[%s380 + $0x28] sm:$0xff]
        %v387 = vld [vmem:[%s380 + $0x30] sm:$0xff]
        %v388 = vld [vmem:[%s380 + $0x38] sm:$0xff]
        %v389 = vld [vmem:[%s380 + $0x40] sm:$0xff]
        %vm390 = vcmask 1045504
        %v391 = vrot.slane %v184, 2
        %v392 = vrot.slane %v185, 2
        %v393 = vsel %vm390, %v391, %v392
        %v394 = vrot.slane %v186, 2
        %v395 = vsel %vm390, %v392, %v394
        %v396 = vsel %vm198, %v393, 0
        %v398 = vsel %vm198, %v395, 0
        %400 = vmatprep.subr.mxu0 0.0
        %401 = vmatpush1.msra.mxu0 %v381
        %402 = vmatprep.subr.mxu0 0.0
        %403 = vmatpush1.msra.mxu0 %v382
        %404 = vmatprep.subr.mxu0 0.0
        %405 = vmatpush1.msra.mxu0 %v383
        %406 = vmatprep.subr.mxu0 0.0
        %407 = vmatpush1.msra.mxu0 %v384
        %408 = vmatprep.subr.mxu0 0.0
        %409 = vmatpush1.msra.mxu0 %v385
        %410 = vmatprep.subr.mxu0 0.0
        %411 = vmatpush1.msra.mxu0 %v386
        %412 = vmatprep.subr.mxu0 0.0
        %413 = vmatpush1.msra.mxu0 %v387
        %414 = vmatprep.subr.mxu0 0.0
        %415 = vmatpush1.msra.mxu0 %v388
        %416 = vmatprep.subr.mxu0 0.0
        %417 = vmatpush1.msra.mxu0 %v389
        %418 = vmatprep.subr.mxu0 0.0
        %419 = vmatpush1.msra.mxu0 0.0
        %420 = vmatprep.subr.mxu0 0.0
        %421 = vmatpush1.msra.mxu0 0.0
        %422 = vmatprep.subr.mxu0 0.0
        %423 = vmatpush1.msra.mxu0 0.0
        %424 = vmatprep.subr.mxu0 0.0
        %425 = vmatpush1.msra.mxu0 0.0
        %426 = vmatprep.subr.mxu0 0.0
        %427 = vmatpush1.msra.mxu0 0.0
        %428 = vmatprep.subr.mxu0 0.0
        %429 = vmatpush1.msra.mxu0 0.0
        %430 = vmatprep.subr.mxu0 0.0
        %431 = vmatpush1.msra.mxu0 0.0
        %432 = vmatprep.subr.mxu0 0.0
        %433 = vmatpush1.msra.mxu0 0.0
        %434 = vmatprep.subr.mxu0 0.0
        %435 = vmatpush1.msra.mxu0 0.0
        %436 = vmatprep.subr.mxu0 0.0
        %437 = vmatpush1.msra.mxu0 0.0
        %438 = vmatprep.subr.mxu0 0.0
        %439 = vmatpush1.msra.mxu0 0.0
        %440 = vmatprep.subr.mxu0 0.0
        %441 = vmatpush1.msra.mxu0 0.0
        %442 = vmatprep.subr.mxu0 0.0
        %443 = vmatpush1.msra.mxu0 0.0
        %444 = vmatprep.subr.mxu0 0.0
        %445 = vmatpush1.msra.mxu0 0.0
        %446 = vmatprep.subr.mxu0 0.0
        %447 = vmatpush1.msra.mxu0 0.0
        %448 = vmatprep.subr.mxu0 0.0
        %449 = vmatpush1.msra.mxu0 0.0
        %450 = vmatprep.subr.mxu0 0.0
        %451 = vmatpush1.msra.mxu0 0.0
        %452 = vmatprep.subr.mxu0 0.0
        %453 = vmatpush1.msra.mxu0 0.0
        %454 = vmatprep.subr.mxu0 0.0
        %455 = vmatpush1.msra.mxu0 0.0
        %456 = vmatprep.subr.mxu0 0.0
        %457 = vmatpush1.msra.mxu0 0.0
        %458 = vmatprep.subr.mxu0 0.0
        %459 = vmatpush1.msra.mxu0 0.0
        %460 = vmatprep.subr.mxu0 0.0
        %461 = vmatpush1.msra.mxu0 0.0
        %462 = vmatprep.subr.mxu0 0.0
        %463 = vmatpush1.msra.mxu0 0.0
        %464 = vmatprep.mubr.f32.mxu0 0.0
        %465 = vmatmul.mubr.f32.gmra.mrb[0].mxu0 %v396
        %v466 = vpop.f32.mrb[0].mxu0
        %v467 = vadd.f32 0.0, %v466
        %v468 = vpop.f32.mrb[0].mxu0
        %469 = vmatprep.mubr.f32.mxu0 0.0
        %470 = vmatmul.mubr.f32.gmra.mrb[0].mxu0 %v398
        %v471 = vpop.f32.mrb[0].mxu0
        %v472 = vadd.f32 0.0, %v471
        %v473 = vpop.f32.mrb[0].mxu0
        %474 = vdwg.mxu0
        %v475 = vadd.f32 %v378, %v467
        %v476 = vadd.f32 %v379, %v472
        %477 = vst [vmem:[%s178] sm:$0xff] %v475
        %478 = vst [vmem:[%s178 + $0x8] sm:$0xff] %v476
        %s479 = sand.u32 %s94, 1
        %s480 = scalar_lea.sflag [#allocation4], %s479
        %s481 = sand.u32 %s94, 1
        %s482 = smul.addr %s481, 16
        %s483 = scalar_lea.vmem [#allocation5], %s482
        // Predicated region
        $region37: #{tpu_custom_call.1} parent=31 // pred_check
          %p484 = pneg %p104
        $region38: #{tpu_custom_call.1} parent=31 // pred_check_branch
          %486 = sbr.rel (%p484) target = $region40
        $region39: #{tpu_custom_call.1} parent=31 // pred_region
          %s488 = ssub.s32 256, 256
          %489 = vsyncadd %s480, %s488
          %s490 = smul.addr %s18, 2
          %s491 = smul.addr %s490, 128
          %s492 = scalar_lea.hbm %s3, %s491
          %s493 = sshll.u32 %s483, 4
          %s494 = int_to_ptr.vmem [resolvable:$true] %s493
          %499 = dma.vmem_to_hbm [thread:$0]  %s494, 256, %s492, %s480, 128, 128, 8
        $region40: #{tpu_custom_call.1} parent=31 // pred_fallthru
          _
      $region32: #{tpu_custom_call.1} parent=5 // pred_fallthru
        _
      %p500 = scmp.le.s32.totalorder 2, %s13
      // Predicated region
      $region41: #{tpu_custom_call.1} parent=5 // pred_check
        %p501 = pneg %p500
      $region42: #{tpu_custom_call.1} parent=5 // pred_check_branch
        %503 = sbr.rel (%p501) target = $region44
      $region43: #{tpu_custom_call.1} parent=5 // pred_region
        %s504 = ssub.s32 %s13, 2
        // Predicated region
        $region45: #{tpu_custom_call.1} parent=43 // pred_check
          %p505 = pneg %p110
        $region46: #{tpu_custom_call.1} parent=43 // pred_check_branch
          %507 = sbr.rel (%p505) target = $region48
        $region47: #{tpu_custom_call.1} parent=43 // pred_region
          %s508 = sand.u32 %s95, 1
          %s509 = scalar_lea.sflag [#allocation4], %s508
          %s510 = sand.u32 %s95, 1
          %s511 = smul.addr %s510, 16
          %s512 = scalar_lea.vmem [#allocation5], %s511
          %513 = dma.done %s509, 256
        $region48: #{tpu_custom_call.1} parent=43 // pred_fallthru
          _
      $region44: #{tpu_custom_call.1} parent=5 // pred_fallthru
        _
    $region6: #{tpu_custom_call.1} parent=1 // loop_footer
      %s17 = sadd.s32 1, %s13
    $region7: #{tpu_custom_call.1} parent=1 // loop_footer_branch
      %12 = sbr.rel target = $region3
    $region8: #{tpu_custom_call.1} parent=1 // loop_exit
      _
    %514 = vsyncpa [#allocation3], 1
    %s515 = scalar_lea.sflag [#allocation3], 1
    %516 = vsyncpa %s515, 1
    %517 = vsyncpa [#allocation4], 1
    %s518 = scalar_lea.sflag [#allocation4], 1
    %519 = vsyncpa %s518, 1

</llo_original>
